<compile_context>
chip_gen: v7x
topology: tpu7x:2x2x1
jax: 0.10.0
libtpu: 0.0.40
codegen_flags: <defaults>
</compile_context>

<pallas_src>
import functools

import jax
import jax.numpy as jnp
from jax.experimental import pallas as pl
from jax.experimental.pallas import tpu as pltpu


def _round_up(n, m):
    return ((n + m - 1) // m) * m


def _vmem_capacity_bytes():
    """Physical VMEM of the local chip; conservative default if unqueryable."""
    try:
        return int(pltpu.get_tpu_info().vmem_capacity_bytes)
    except Exception:
        return 64 << 20          # v7x-sized conservative default


def _resident_spec(shape):
    """Full-array operand, constant block index => resident across the grid.

    Single-buffered when the jax version supports pipeline_mode (the second
    buffer is never used for a constant index map)."""
    index_map = lambda i: (0,) * len(shape)
    try:
        return pl.BlockSpec(shape, index_map, pipeline_mode=pl.Buffered(1))
    except TypeError:            # older jax without pipeline_mode kwarg
        return pl.BlockSpec(shape, index_map)


# ---------------------------------------------------------------------------
# Fused resident-weights kernel (default path)
# ---------------------------------------------------------------------------
def projector_kernel(x_ref,
                     w0_ref, b0_ref,
                     w1_ref, b1_ref,
                     w2_ref, b2_ref,
                     w3_ref, b3_ref,
                     o_ref):
    """Fused 4-layer linear chain on one tile of tokens.

    bf16 operands into every matmul, f32 accumulation on the MXU, f32 bias add.
    Dropout is identity (eval mode), so nothing happens between layers.
    """
    h = jnp.dot(x_ref[...], w0_ref[...],
                preferred_element_type=jnp.float32) + b0_ref[...]        # inp_layer
    h = jnp.dot(h.astype(jnp.bfloat16), w1_ref[...],
                preferred_element_type=jnp.float32) + b1_ref[...]        # layers[0]
    h = jnp.dot(h.astype(jnp.bfloat16), w2_ref[...],
                preferred_element_type=jnp.float32) + b2_ref[...]        # layers[1]
    y = jnp.dot(h.astype(jnp.bfloat16), w3_ref[...],
                preferred_element_type=jnp.float32) + b3_ref[...]        # out_layer
    o_ref[...] = y.astype(o_ref.dtype)


# ---------------------------------------------------------------------------
# Streamed-weights fallback (one Linear layer, weight tiles over an N/K grid)
# ---------------------------------------------------------------------------
def _linear_kernel(x_ref, w_ref, b_ref, o_ref, acc_ref):
    @pl.when(pl.program_id(2) == 0)
    def _():
        acc_ref[...] = jnp.zeros_like(acc_ref)

    acc_ref[...] += jnp.dot(x_ref[...], w_ref[...],
                            preferred_element_type=jnp.float32)

    @pl.when(pl.program_id(2) == pl.num_programs(2) - 1)
    def _():
        o_ref[...] = (acc_ref[...] + b_ref[...]).astype(o_ref.dtype)


def _linear_streamed(x, w, b, out_dtype, *, tm):
    """One Linear layer with weight tiles streamed from HBM.

    Used only when the full 4-layer weight set no longer fits VMEM resident.
    All dims are already padded to multiples of 128 (rows to a multiple of tm).
    """
    M, K = x.shape
    N = w.shape[1]
    tk = 256 if K % 256 == 0 else 128
    tn = 256 if N % 256 == 0 else 128
    grid = (M // tm, N // tn, K // tk)
    return pl.pallas_call(
        _linear_kernel,
        out_shape=jax.ShapeDtypeStruct((M, N), out_dtype),
        grid_spec=pltpu.PrefetchScalarGridSpec(
            num_scalar_prefetch=0,
            grid=grid,
            in_specs=[
                pl.BlockSpec((tm, tk), lambda i, j, k: (i, k)),
                pl.BlockSpec((tk, tn), lambda i, j, k: (k, j)),
                pl.BlockSpec((1, tn), lambda i, j, k: (0, j)),
            ],
            out_specs=pl.BlockSpec((tm, tn), lambda i, j, k: (i, j)),
            scratch_shapes=[pltpu.VMEM((tm, tn), jnp.float32)],
        ),
        compiler_params=pltpu.CompilerParams(
            dimension_semantics=("parallel", "parallel", "arbitrary")),
    )(x, w, b)


# ---------------------------------------------------------------------------
# One-time parameter preparation (hoisted out of the per-call path)
# ---------------------------------------------------------------------------
def prepare_projector_params(params):
    """Pad params lane-dense (multiples of 128) and cast weights to bf16 ONCE.

    params: 4 (W, b) pairs (inp_layer, 2 hidden, out_layer); W [in_dim, out_dim],
    b [1, out_dim]. Zero-padded weight rows multiply zero input lanes and
    zero-padded weight/bias columns produce exact zeros, so padded feature
    lanes stay exactly zero through the whole chain.
    Returns (padded_params, in_features, out_features).
    """
    (w0, b0), (w1, b1), (w2, b2), (w3, b3) = params
    in_features = w0.shape[0]
    out_features = w3.shape[1]
    in_p = _round_up(in_features, 128)
    out_p = _round_up(out_features, 128)

    def pad_w(w, k, n):
        return jnp.pad(w, ((0, k - w.shape[0]), (0, n - w.shape[1]))).astype(jnp.bfloat16)

    def pad_b(b, n):
        return jnp.pad(b, ((0, 0), (0, n - b.shape[1]))).astype(jnp.float32)

    padded = (
        (pad_w(w0, in_p, out_p), pad_b(b0, out_p)),
        (pad_w(w1, out_p, out_p), pad_b(b1, out_p)),
        (pad_w(w2, out_p, out_p), pad_b(b2, out_p)),
        (pad_w(w3, out_p, out_p), pad_b(b3, out_p)),
    )
    return padded, in_features, out_features


# ---------------------------------------------------------------------------
# Forward pass
# ---------------------------------------------------------------------------
@functools.partial(jax.jit, static_argnames=("out_features", "out_dtype", "tm_max"))
def projector_forward(x, padded_params, *, out_features, out_dtype=None, tm_max=256):
    """x: [M, in_features] -> [M, out_features].

    padded_params: output of prepare_projector_params (bf16 weights, f32
    biases, already lane-dense). Weights stay resident in VMEM while token
    tiles of size tm stream through; falls back to streamed weight tiles when
    the projector is too wide to keep resident.
    """
    (w0, b0), (w1, b1), (w2, b2), (w3, b3) = padded_params
    M, in_features = x.shape
    in_p, out_p = w0.shape
    if out_dtype is None:
        out_dtype = x.dtype
    out_dtype = jnp.dtype(out_dtype)

    # Token tile: >=2 grid steps when M > 8 (keeps both v7x TensorCores busy),
    # capped at 128 for very wide projectors (v5e intermediate/store pressure),
    # and only round_up(M, 8) for tiny M (no 16x zero-row padding).
    cap = tm_max if out_p < 2048 else min(tm_max, 128)
    if M <= 8:
        tm = 8
    else:
        tm = max(8, min(cap, _round_up(-(-M // 2), 8)))
    m_p = _round_up(M, tm)
    grid = (m_p // tm,)

    # Pad x rows to a tile multiple and features lane-dense; cast to bf16.
    # Padded rows equal the summed biases but are sliced off below; padded
    # feature lanes are exactly zero (zero-padded weights/biases).
    x_p = jnp.pad(x, ((0, m_p - M), (0, in_p - in_features))).astype(jnp.bfloat16)

    # --- VMEM budget (generation-aware cap) --------------------------------
    vmem_cap = int(0.8 * _vmem_capacity_bytes())     # ~51 MiB v7x, ~102 MiB v5e/v6e
    # Weights counted x2 as a hedge in case single-buffering isn't honored.
    w_bytes = 2 * 2 * (w0.size + w1.size + w2.size + w3.size)      # bf16
    b_bytes = 2 * 4 * (b0.size + b1.size + b2.size + b3.size)      # f32
    x_bytes = 2 * tm * in_p * 2                                    # bf16 tile, double-buffered
    o_bytes = 2 * tm * out_p * out_dtype.itemsize                  # out tile, double-buffered
    inter_bytes = 3 * tm * out_p * 4                               # f32 h between layers
    need = int(1.25 * (w_bytes + b_bytes + x_bytes + o_bytes + inter_bytes))

    flops = 2 * m_p * (in_p * out_p + 3 * out_p * out_p)
    bytes_accessed = (x_p.size * 2
                      + 2 * (w0.size + w1.size + w2.size + w3.size)
                      + 4 * (b0.size + b1.size + b2.size + b3.size)
                      + m_p * out_p * out_dtype.itemsize)
    cost = pl.CostEstimate(flops=flops, transcendentals=0,
                           bytes_accessed=bytes_accessed)

    if need <= vmem_cap:
        # ---- Fused resident-weights path -----------------------------------
        vmem_limit = min(max(need, 32 << 20), vmem_cap)
        grid_spec = pltpu.PrefetchScalarGridSpec(
            num_scalar_prefetch=0,
            grid=grid,
            in_specs=[
                pl.BlockSpec((tm, in_p), lambda i: (i, 0)),   # streamed x tile
                _resident_spec(w0.shape), _resident_spec(b0.shape),
                _resident_spec(w1.shape), _resident_spec(b1.shape),
                _resident_spec(w2.shape), _resident_spec(b2.shape),
                _resident_spec(w3.shape), _resident_spec(b3.shape),
            ],
            out_specs=pl.BlockSpec((tm, out_p), lambda i: (i, 0)),
        )
        y_p = pl.pallas_call(
            projector_kernel,
            out_shape=jax.ShapeDtypeStruct((m_p, out_p), out_dtype),
            grid_spec=grid_spec,
            cost_estimate=cost,
            compiler_params=pltpu.CompilerParams(
                dimension_semantics=("parallel",),
                vmem_limit_bytes=vmem_limit),
        )(x_p, w0, b0, w1, b1, w2, b2, w3, b3)
    else:
        # ---- Streamed-weights fallback (projector too wide for VMEM) -------
        h = _linear_streamed(x_p, w0, b0, jnp.bfloat16, tm=tm)
        h = _linear_streamed(h, w1, b1, jnp.bfloat16, tm=tm)
        h = _linear_streamed(h, w2, b2, jnp.bfloat16, tm=tm)
        y_p = _linear_streamed(h, w3, b3, out_dtype, tm=tm)

    # Strip M / feature padding (outside the kernel -> lane-dense out spec).
    return y_p[:M, :out_features]


# ---------------------------------------------------------------------------
# Synthetic init + reference
# ---------------------------------------------------------------------------
def init_projector_params(key, in_features, out_features, num_hidden=2,
                          dtype=jnp.float32):
    """Deterministic synthetic init matching the PyTorch module's shapes.

    nn.Linear(in, out) has weight [out, in] and bias [out]; we store the weight
    transposed ([in, out]) and the bias as [1, out]. PyTorch-like
    U(-1/sqrt(fan_in), 1/sqrt(fan_in)) init.
    """
    dims = [(in_features, out_features)]                 # inp_layer
    dims += [(out_features, out_features)] * num_hidden  # hidden layers
    dims += [(out_features, out_features)]               # out_layer

    params = []
    for (fan_in, fan_out) in dims:
        key, kw, kb = jax.random.split(key, 3)
        bound = 1.0 / jnp.sqrt(jnp.asarray(fan_in, jnp.float32))
        w = jax.random.uniform(kw, (fan_in, fan_out), dtype, -bound, bound)
        b = jax.random.uniform(kb, (1, fan_out), dtype, -bound, bound)
        params.append((w, b))
    return tuple(params)


def projector_reference(x, params):
    """Plain-JAX f32 reference for correctness checking."""
    h = x
    for (w, b) in params:
        h = h @ w + b        # dropout(eval) == identity
    return h


if __name__ == "__main__":
    key = jax.random.PRNGKey(0)

    batch, seq = 2, 8
    in_features, out_features = 32, 64
    num_hidden = 2   # kernel is specialized to the module default (4 linears total)

    kx, kp = jax.random.split(key)
    # Input feature embeddings: [batch, seq, in_features] -> flatten token axis.
    x3 = jax.random.normal(kx, (batch, seq, in_features), jnp.float32)
    x = x3.reshape(batch * seq, in_features)   # [M, in_features], M = 16

    params = init_projector_params(kp, in_features, out_features, num_hidden)

    # One-time prep (padding + bf16 cast) hoisted out of the forward pass.
    padded_params, _, out_f = prepare_projector_params(params)

    y = projector_forward(x, padded_params, out_features=out_f)
    y = jax.block_until_ready(y)

    y_ref = projector_reference(x, params)
    assert y.shape == (batch * seq, out_features)
    # bf16 MXU operands with f32 accumulation -> looser tolerance vs pure-f32 ref.
    assert jnp.allclose(y, y_ref, atol=2e-2, rtol=2e-2), "mismatch vs reference"

    # Restore the leading batch/seq axes like the PyTorch module would return.
    y_out = y.reshape(batch, seq, out_features)
    jax.block_until_ready(y_out)

    print("KERNEL_OK")
</pallas_src>

<mosaic_0001>
module attributes {stable_mosaic.version = 11 : i64} {
  func.func @projector_kernel(%arg0: i32, %arg1: memref<8x128xbf16, #tpu.memory_space<vmem>>, %arg2: memref<128x128xbf16, #tpu.memory_space<vmem>>, %arg3: memref<1x128xf32, #tpu.memory_space<vmem>>, %arg4: memref<128x128xbf16, #tpu.memory_space<vmem>>, %arg5: memref<1x128xf32, #tpu.memory_space<vmem>>, %arg6: memref<128x128xbf16, #tpu.memory_space<vmem>>, %arg7: memref<1x128xf32, #tpu.memory_space<vmem>>, %arg8: memref<128x128xbf16, #tpu.memory_space<vmem>>, %arg9: memref<1x128xf32, #tpu.memory_space<vmem>>, %arg10: memref<8x128xf32, #tpu.memory_space<vmem>>) attributes {dimension_semantics = [#tpu.dimension_semantics<parallel>], iteration_bounds = array<i64: 2>, scalar_prefetch = 0 : i64, scratch_operands = 0 : i64, tpu.core_type = #tpu.core_type<tc>, window_params = [{transform_indices = @transform_0, window_bounds = array<i64: 8, 128>}, {pipeline_mode = #tpu.pipeline_mode<synchronous>, transform_indices = @transform_1, window_bounds = array<i64: 128, 128>}, {pipeline_mode = #tpu.pipeline_mode<synchronous>, transform_indices = @transform_2, window_bounds = array<i64: 1, 128>}, {pipeline_mode = #tpu.pipeline_mode<synchronous>, transform_indices = @transform_3, window_bounds = array<i64: 128, 128>}, {pipeline_mode = #tpu.pipeline_mode<synchronous>, transform_indices = @transform_4, window_bounds = array<i64: 1, 128>}, {pipeline_mode = #tpu.pipeline_mode<synchronous>, transform_indices = @transform_5, window_bounds = array<i64: 128, 128>}, {pipeline_mode = #tpu.pipeline_mode<synchronous>, transform_indices = @transform_6, window_bounds = array<i64: 1, 128>}, {pipeline_mode = #tpu.pipeline_mode<synchronous>, transform_indices = @transform_7, window_bounds = array<i64: 128, 128>}, {pipeline_mode = #tpu.pipeline_mode<synchronous>, transform_indices = @transform_8, window_bounds = array<i64: 1, 128>}, {transform_indices = @transform_9, window_bounds = array<i64: 8, 128>}]} {
    %c0 = arith.constant 0 : index
    %c0_0 = arith.constant 0 : index
    %0 = vector.load %arg1[%c0, %c0_0] : memref<8x128xbf16, #tpu.memory_space<vmem>>, vector<8x128xbf16>
    %c0_1 = arith.constant 0 : index
    %c0_2 = arith.constant 0 : index
    %1 = vector.load %arg2[%c0_1, %c0_2] : memref<128x128xbf16, #tpu.memory_space<vmem>>, vector<128x128xbf16>
    %cst = arith.constant dense<0.000000e+00> : vector<8x128xf32>
    %2 = tpu.matmul %0, %1, %cst {dimension_numbers = #tpu.dot_dimension_numbers<[1], [0], [0], [1], [0, 0, 1, 1], [], []>} : vector<8x128xbf16>, vector<128x128xbf16>, vector<8x128xf32> -> vector<8x128xf32>
    %c0_3 = arith.constant 0 : index
    %c0_4 = arith.constant 0 : index
    %3 = vector.load %arg3[%c0_3, %c0_4] : memref<1x128xf32, #tpu.memory_space<vmem>>, vector<1x128xf32>
    %4 = vector.broadcast %3 : vector<1x128xf32> to vector<8x128xf32>
    %5 = arith.addf %2, %4 : vector<8x128xf32>
    %6 = arith.truncf %5 : vector<8x128xf32> to vector<8x128xbf16>
    %c0_5 = arith.constant 0 : index
    %c0_6 = arith.constant 0 : index
    %7 = vector.load %arg4[%c0_5, %c0_6] : memref<128x128xbf16, #tpu.memory_space<vmem>>, vector<128x128xbf16>
    %cst_7 = arith.constant dense<0.000000e+00> : vector<8x128xf32>
    %8 = tpu.matmul %6, %7, %cst_7 {dimension_numbers = #tpu.dot_dimension_numbers<[1], [0], [0], [1], [0, 0, 1, 1], [], []>} : vector<8x128xbf16>, vector<128x128xbf16>, vector<8x128xf32> -> vector<8x128xf32>
    %c0_8 = arith.constant 0 : index
    %c0_9 = arith.constant 0 : index
    %9 = vector.load %arg5[%c0_8, %c0_9] : memref<1x128xf32, #tpu.memory_space<vmem>>, vector<1x128xf32>
    %10 = vector.broadcast %9 : vector<1x128xf32> to vector<8x128xf32>
    %11 = arith.addf %8, %10 : vector<8x128xf32>
    %12 = arith.truncf %11 : vector<8x128xf32> to vector<8x128xbf16>
    %c0_10 = arith.constant 0 : index
    %c0_11 = arith.constant 0 : index
    %13 = vector.load %arg6[%c0_10, %c0_11] : memref<128x128xbf16, #tpu.memory_space<vmem>>, vector<128x128xbf16>
    %cst_12 = arith.constant dense<0.000000e+00> : vector<8x128xf32>
    %14 = tpu.matmul %12, %13, %cst_12 {dimension_numbers = #tpu.dot_dimension_numbers<[1], [0], [0], [1], [0, 0, 1, 1], [], []>} : vector<8x128xbf16>, vector<128x128xbf16>, vector<8x128xf32> -> vector<8x128xf32>
    %c0_13 = arith.constant 0 : index
    %c0_14 = arith.constant 0 : index
    %15 = vector.load %arg7[%c0_13, %c0_14] : memref<1x128xf32, #tpu.memory_space<vmem>>, vector<1x128xf32>
    %16 = vector.broadcast %15 : vector<1x128xf32> to vector<8x128xf32>
    %17 = arith.addf %14, %16 : vector<8x128xf32>
    %18 = arith.truncf %17 : vector<8x128xf32> to vector<8x128xbf16>
    %c0_15 = arith.constant 0 : index
    %c0_16 = arith.constant 0 : index
    %19 = vector.load %arg8[%c0_15, %c0_16] : memref<128x128xbf16, #tpu.memory_space<vmem>>, vector<128x128xbf16>
    %cst_17 = arith.constant dense<0.000000e+00> : vector<8x128xf32>
    %20 = tpu.matmul %18, %19, %cst_17 {dimension_numbers = #tpu.dot_dimension_numbers<[1], [0], [0], [1], [0, 0, 1, 1], [], []>} : vector<8x128xbf16>, vector<128x128xbf16>, vector<8x128xf32> -> vector<8x128xf32>
    %c0_18 = arith.constant 0 : index
    %c0_19 = arith.constant 0 : index
    %21 = vector.load %arg9[%c0_18, %c0_19] : memref<1x128xf32, #tpu.memory_space<vmem>>, vector<1x128xf32>
    %22 = vector.broadcast %21 : vector<1x128xf32> to vector<8x128xf32>
    %23 = arith.addf %20, %22 : vector<8x128xf32>
    %c0_20 = arith.constant 0 : index
    %c0_21 = arith.constant 0 : index
    %24 = vector.load %arg10[%c0_20, %c0_21] : memref<8x128xf32, #tpu.memory_space<vmem>>, vector<8x128xf32>
    tpu.vector_store %arg10[%c0_20, %c0_21], %23 {strides = array<i32>} : memref<8x128xf32, #tpu.memory_space<vmem>>, vector<8x128xf32>,
    return
  }
  func.func @transform_0(%arg0: i32) -> (i32, i32) {
    %c0_i32 = arith.constant 0 : i32
    %c0_i32_0 = arith.constant 0 : i32
    return %arg0, %c0_i32 : i32, i32
  }
  func.func @transform_1(%arg0: i32) -> (i32, i32) {
    %c0_i32 = arith.constant 0 : i32
    %c0_i32_0 = arith.constant 0 : i32
    %c0_i32_1 = arith.constant 0 : i32
    return %c0_i32, %c0_i32_0 : i32, i32
  }
  func.func @transform_2(%arg0: i32) -> (i32, i32) {
    %c0_i32 = arith.constant 0 : i32
    %c0_i32_0 = arith.constant 0 : i32
    %c0_i32_1 = arith.constant 0 : i32
    return %c0_i32, %c0_i32_0 : i32, i32
  }
  func.func @transform_3(%arg0: i32) -> (i32, i32) {
    %c0_i32 = arith.constant 0 : i32
    %c0_i32_0 = arith.constant 0 : i32
    %c0_i32_1 = arith.constant 0 : i32
    return %c0_i32, %c0_i32_0 : i32, i32
  }
  func.func @transform_4(%arg0: i32) -> (i32, i32) {
    %c0_i32 = arith.constant 0 : i32
    %c0_i32_0 = arith.constant 0 : i32
    %c0_i32_1 = arith.constant 0 : i32
    return %c0_i32, %c0_i32_0 : i32, i32
  }
  func.func @transform_5(%arg0: i32) -> (i32, i32) {
    %c0_i32 = arith.constant 0 : i32
    %c0_i32_0 = arith.constant 0 : i32
    %c0_i32_1 = arith.constant 0 : i32
    return %c0_i32, %c0_i32_0 : i32, i32
  }
  func.func @transform_6(%arg0: i32) -> (i32, i32) {
    %c0_i32 = arith.constant 0 : i32
    %c0_i32_0 = arith.constant 0 : i32
    %c0_i32_1 = arith.constant 0 : i32
    return %c0_i32, %c0_i32_0 : i32, i32
  }
  func.func @transform_7(%arg0: i32) -> (i32, i32) {
    %c0_i32 = arith.constant 0 : i32
    %c0_i32_0 = arith.constant 0 : i32
    %c0_i32_1 = arith.constant 0 : i32
    return %c0_i32, %c0_i32_0 : i32, i32
  }
  func.func @transform_8(%arg0: i32) -> (i32, i32) {
    %c0_i32 = arith.constant 0 : i32
    %c0_i32_0 = arith.constant 0 : i32
    %c0_i32_1 = arith.constant 0 : i32
    return %c0_i32, %c0_i32_0 : i32, i32
  }
  func.func @transform_9(%arg0: i32) -> (i32, i32) {
    %c0_i32 = arith.constant 0 : i32
    %c0_i32_0 = arith.constant 0 : i32
    return %arg0, %c0_i32 : i32, i32
  }
}

</mosaic_0001>

<llo_original>
// kernel: projector_forward.1
$region0: #{projector_forward.1}
  #allocation0 [shape = 'u32[]', space=smem, size = 0x4, offset = 0x4, fixed_abs, tag = 'smem constant byte address 0x4 - core index']
  #allocation1 [shape = 'u32[144,128]{1,0:T(1,128)}', space=vmem, size = 0x12000, scoped, tag = 'internal scratch']
  %s0 = inlined_call_operand.vmem [shape: bf16[16,128], index: 0, kind: input, shape index: {}]
  %s1 = inlined_call_operand.hbm [shape: bf16[128,128], index: 1, kind: input, shape index: {}]
  %s2 = inlined_call_operand.vmem [shape: f32[1,128], index: 2, kind: input, shape index: {}]
  %s3 = inlined_call_operand.hbm [shape: bf16[128,128], index: 3, kind: input, shape index: {}]
  %s4 = inlined_call_operand.vmem [shape: f32[1,128], index: 4, kind: input, shape index: {}]
  %s5 = inlined_call_operand.hbm [shape: bf16[128,128], index: 5, kind: input, shape index: {}]
  %s6 = inlined_call_operand.vmem [shape: f32[1,128], index: 6, kind: input, shape index: {}]
  %s7 = inlined_call_operand.vmem [shape: bf16[128,128], index: 7, kind: input, shape index: {}]
  %s8 = inlined_call_operand.vmem [shape: f32[1,128], index: 8, kind: input, shape index: {}]
  %s9 = inlined_call_operand.hbm [shape: f32[16,128], index: 9, kind: output, shape index: {}]
  %s10 = sld [smem:[#allocation0]]
  $region81: #{projector_forward.1} parent=0
    _
  %s12 = ssub.s32 1, %s10
  %s13 = scalar_select 0, %s12, %s10
  $region1: #{projector_forward.1} parent=0
    #allocation2 [shape = 'u8[32768]{0}', space=vmem, size = 0x8000, scoped, tag = 'input window, operand 1, single buffered']
    #allocation3 [shape = 's32[2]{0}', space=sflag, size = 0x8, scoped, tag = 'scoped memory for projector_forward.1']
    #allocation4 [shape = 's32[2]{0}', space=sflag, size = 0x8, scoped, tag = 'scoped memory for projector_forward.1']
    #allocation5 [shape = 'u8[32768]{0}', space=vmem, size = 0x8000, scoped, tag = 'input window, operand 3, single buffered']
    #allocation6 [shape = 's32[1]{0}', space=sflag, size = 0x4, scoped, tag = 'scoped memory for projector_forward.1']
    #allocation7 [shape = 'u8[32768]{0}', space=vmem, size = 0x8000, scoped, tag = 'input window, operand 5, single buffered']
    #allocation8 [shape = 'u8[8192]{0}', space=vmem, size = 0x2000, scoped, tag = 'output window, operand 0']
    %14 = vsyncpa [#allocation3], 0
    %15 = vsyncpa [#allocation6], 0
    %16 = vsyncpa [#allocation4], 0
    %s17 = scalar_lea.sflag [#allocation4], 1
    %18 = vsyncpa %s17, 0
    loop: start=0, step=1, limit=4
    $region2: #{projector_forward.1} parent=1 // loop_pre_header
      _
    $region3: #{projector_forward.1} parent=1 // loop_header
      %s20 = sphi 0, %s24
      %p21 = scmp.ge.s32.totalorder %s20, 4
      %s30 = sphi 0, %s32
      %s33 = sphi 0, %s30
      %s34 = sphi 0, %s33
      %s50 = sphi 0, %s34
      %s54 = sphi 0, %s54
      %s56 = sphi 0, %s54
      %s57 = sphi 0, %s56
      %s71 = sphi 0, %s57
      %s75 = sphi 0, %s75
      %s77 = sphi 0, %s75
      %s78 = sphi 0, %s77
      %s92 = sphi 0, %s78
      %s96 = sphi 0, %s96
      %s98 = sphi 0, %s96
      %s99 = sphi 0, %s98
      %s113 = sphi 0, %s99
      %s117 = sphi 0, %s117
      %s119 = sphi 0, %s117
      %s120 = sphi 0, %s119
      %s134 = sphi 0, %s120
      %s138 = sphi 0, %s138
      %s140 = sphi 0, %s138
      %s141 = sphi 0, %s140
      %s155 = sphi 0, %s141
      %s159 = sphi 0, %s159
      %s161 = sphi 0, %s159
      %s162 = sphi 0, %s161
      %s176 = sphi 0, %s162
      %s180 = sphi 0, %s180
      %s182 = sphi 0, %s180
      %s183 = sphi 0, %s182
      %s197 = sphi 0, %s183
      %s201 = sphi 0, %s201
      %s203 = sphi 0, %s201
      %s204 = sphi 0, %s203
      %s218 = sphi 0, %s204
      %s224 = sphi 0, %s226
      %s227 = sphi 0, %s224
      %s228 = sphi 0, %s227
      %s244 = sphi 0, %s228
    $region4: #{projector_forward.1} parent=1 // loop_header_branch
      %23 = sbr.rel (%p21) target = $region8
    $region5: #{projector_forward.1} parent=1 // loop_body
      %s25 = ssub.s32 %s20, 1
      %s26 = ssub.s32 %s20, 2
      %s27 = sadd.s32 %s20, 1
      %s28 = ssub.s32 %s20, %s27
      %p29 = scmp.eq.s32.totalorder %s28, 0
      %s31 = sadd.s32 %s30, 1
      %s32 = scalar_select %p29, %s30, %s31
      %p35 = pneg %p29
      %p36 = scmp.eq.s32.totalorder %s20, 1
      %p37 = por %p35, %p36
      %p38 = scmp.ne.s32.totalorder %s30, %s33
      %p39 = scmp.eq.s32.totalorder %s20, 0
      %p40 = por %p38, %p39
      %p41 = scmp.ne.s32.totalorder %s30, %s33
      %p42 = scmp.eq.s32.totalorder %s25, 1
      %p43 = por %p41, %p42
      %p44 = scmp.ne.s32.totalorder %s33, %s34
      %p45 = scmp.eq.s32.totalorder %s25, 0
      %p46 = por %p44, %p45
      %p47 = scmp.ne.s32.totalorder %s33, %s34
      %p48 = scmp.eq.s32.totalorder %s26, 1
      %p49 = por %p47, %p48
      %p51 = scmp.ne.s32.totalorder %s34, %s50
      %p52 = scmp.eq.s32.totalorder %s26, 0
      %p53 = por %p51, %p52
      %s55 = sadd.s32 %s54, 1
      %p58 = scmp.eq.s32.totalorder %s20, 1
      %p59 = scmp.ne.s32.totalorder %s54, %s56
      %p60 = scmp.eq.s32.totalorder %s20, 0
      %p61 = por %p59, %p60
      %p62 = scmp.ne.s32.totalorder %s54, %s56
      %p63 = scmp.eq.s32.totalorder %s25, 1
      %p64 = por %p62, %p63
      %p65 = scmp.ne.s32.totalorder %s56, %s57
      %p66 = scmp.eq.s32.totalorder %s25, 0
      %p67 = por %p65, %p66
      %p68 = scmp.ne.s32.totalorder %s56, %s57
      %p69 = scmp.eq.s32.totalorder %s26, 1
      %p70 = por %p68, %p69
      %p72 = scmp.ne.s32.totalorder %s57, %s71
      %p73 = scmp.eq.s32.totalorder %s26, 0
      %p74 = por %p72, %p73
      %s76 = sadd.s32 %s75, 1
      %p79 = scmp.eq.s32.totalorder %s20, 1
      %p80 = scmp.ne.s32.totalorder %s75, %s77
      %p81 = scmp.eq.s32.totalorder %s20, 0
      %p82 = por %p80, %p81
      %p83 = scmp.ne.s32.totalorder %s75, %s77
      %p84 = scmp.eq.s32.totalorder %s25, 1
      %p85 = por %p83, %p84
      %p86 = scmp.ne.s32.totalorder %s77, %s78
      %p87 = scmp.eq.s32.totalorder %s25, 0
      %p88 = por %p86, %p87
      %p89 = scmp.ne.s32.totalorder %s77, %s78
      %p90 = scmp.eq.s32.totalorder %s26, 1
      %p91 = por %p89, %p90
      %p93 = scmp.ne.s32.totalorder %s78, %s92
      %p94 = scmp.eq.s32.totalorder %s26, 0
      %p95 = por %p93, %p94
      %s97 = sadd.s32 %s96, 1
      %p100 = scmp.eq.s32.totalorder %s20, 1
      %p101 = scmp.ne.s32.totalorder %s96, %s98
      %p102 = scmp.eq.s32.totalorder %s20, 0
      %p103 = por %p101, %p102
      %p104 = scmp.ne.s32.totalorder %s96, %s98
      %p105 = scmp.eq.s32.totalorder %s25, 1
      %p106 = por %p104, %p105
      %p107 = scmp.ne.s32.totalorder %s98, %s99
      %p108 = scmp.eq.s32.totalorder %s25, 0
      %p109 = por %p107, %p108
      %p110 = scmp.ne.s32.totalorder %s98, %s99
      %p111 = scmp.eq.s32.totalorder %s26, 1
      %p112 = por %p110, %p111
      %p114 = scmp.ne.s32.totalorder %s99, %s113
      %p115 = scmp.eq.s32.totalorder %s26, 0
      %p116 = por %p114, %p115
      %s118 = sadd.s32 %s117, 1
      %p121 = scmp.eq.s32.totalorder %s20, 1
      %p122 = scmp.ne.s32.totalorder %s117, %s119
      %p123 = scmp.eq.s32.totalorder %s20, 0
      %p124 = por %p122, %p123
      %p125 = scmp.ne.s32.totalorder %s117, %s119
      %p126 = scmp.eq.s32.totalorder %s25, 1
      %p127 = por %p125, %p126
      %p128 = scmp.ne.s32.totalorder %s119, %s120
      %p129 = scmp.eq.s32.totalorder %s25, 0
      %p130 = por %p128, %p129
      %p131 = scmp.ne.s32.totalorder %s119, %s120
      %p132 = scmp.eq.s32.totalorder %s26, 1
      %p133 = por %p131, %p132
      %p135 = scmp.ne.s32.totalorder %s120, %s134
      %p136 = scmp.eq.s32.totalorder %s26, 0
      %p137 = por %p135, %p136
      %s139 = sadd.s32 %s138, 1
      %p142 = scmp.eq.s32.totalorder %s20, 1
      %p143 = scmp.ne.s32.totalorder %s138, %s140
      %p144 = scmp.eq.s32.totalorder %s20, 0
      %p145 = por %p143, %p144
      %p146 = scmp.ne.s32.totalorder %s138, %s140
      %p147 = scmp.eq.s32.totalorder %s25, 1
      %p148 = por %p146, %p147
      %p149 = scmp.ne.s32.totalorder %s140, %s141
      %p150 = scmp.eq.s32.totalorder %s25, 0
      %p151 = por %p149, %p150
      %p152 = scmp.ne.s32.totalorder %s140, %s141
      %p153 = scmp.eq.s32.totalorder %s26, 1
      %p154 = por %p152, %p153
      %p156 = scmp.ne.s32.totalorder %s141, %s155
      %p157 = scmp.eq.s32.totalorder %s26, 0
      %p158 = por %p156, %p157
      %s160 = sadd.s32 %s159, 1
      %p163 = scmp.eq.s32.totalorder %s20, 1
      %p164 = scmp.ne.s32.totalorder %s159, %s161
      %p165 = scmp.eq.s32.totalorder %s20, 0
      %p166 = por %p164, %p165
      %p167 = scmp.ne.s32.totalorder %s159, %s161
      %p168 = scmp.eq.s32.totalorder %s25, 1
      %p169 = por %p167, %p168
      %p170 = scmp.ne.s32.totalorder %s161, %s162
      %p171 = scmp.eq.s32.totalorder %s25, 0
      %p172 = por %p170, %p171
      %p173 = scmp.ne.s32.totalorder %s161, %s162
      %p174 = scmp.eq.s32.totalorder %s26, 1
      %p175 = por %p173, %p174
      %p177 = scmp.ne.s32.totalorder %s162, %s176
      %p178 = scmp.eq.s32.totalorder %s26, 0
      %p179 = por %p177, %p178
      %s181 = sadd.s32 %s180, 1
      %p184 = scmp.eq.s32.totalorder %s20, 1
      %p185 = scmp.ne.s32.totalorder %s180, %s182
      %p186 = scmp.eq.s32.totalorder %s20, 0
      %p187 = por %p185, %p186
      %p188 = scmp.ne.s32.totalorder %s180, %s182
      %p189 = scmp.eq.s32.totalorder %s25, 1
      %p190 = por %p188, %p189
      %p191 = scmp.ne.s32.totalorder %s182, %s183
      %p192 = scmp.eq.s32.totalorder %s25, 0
      %p193 = por %p191, %p192
      %p194 = scmp.ne.s32.totalorder %s182, %s183
      %p195 = scmp.eq.s32.totalorder %s26, 1
      %p196 = por %p194, %p195
      %p198 = scmp.ne.s32.totalorder %s183, %s197
      %p199 = scmp.eq.s32.totalorder %s26, 0
      %p200 = por %p198, %p199
      %s202 = sadd.s32 %s201, 1
      %p205 = scmp.eq.s32.totalorder %s20, 1
      %p206 = scmp.ne.s32.totalorder %s201, %s203
      %p207 = scmp.eq.s32.totalorder %s20, 0
      %p208 = por %p206, %p207
      %p209 = scmp.ne.s32.totalorder %s201, %s203
      %p210 = scmp.eq.s32.totalorder %s25, 1
      %p211 = por %p209, %p210
      %p212 = scmp.ne.s32.totalorder %s203, %s204
      %p213 = scmp.eq.s32.totalorder %s25, 0
      %p214 = por %p212, %p213
      %p215 = scmp.ne.s32.totalorder %s203, %s204
      %p216 = scmp.eq.s32.totalorder %s26, 1
      %p217 = por %p215, %p216
      %p219 = scmp.ne.s32.totalorder %s204, %s218
      %p220 = scmp.eq.s32.totalorder %s26, 0
      %p221 = por %p219, %p220
      %s222 = ssub.s32 %s20, %s27
      %p223 = scmp.eq.s32.totalorder %s222, 0
      %s225 = sadd.s32 %s224, 1
      %s226 = scalar_select %p223, %s224, %s225
      %p229 = pneg %p223
      %p230 = scmp.eq.s32.totalorder %s20, 1
      %p231 = por %p229, %p230
      %p232 = scmp.ne.s32.totalorder %s224, %s227
      %p233 = scmp.eq.s32.totalorder %s20, 0
      %p234 = por %p232, %p233
      %p235 = scmp.ne.s32.totalorder %s224, %s227
      %p236 = scmp.eq.s32.totalorder %s25, 1
      %p237 = por %p235, %p236
      %p238 = scmp.ne.s32.totalorder %s227, %s228
      %p239 = scmp.eq.s32.totalorder %s25, 0
      %p240 = por %p238, %p239
      %p241 = scmp.ne.s32.totalorder %s227, %s228
      %p242 = scmp.eq.s32.totalorder %s26, 1
      %p243 = por %p241, %p242
      %p245 = scmp.ne.s32.totalorder %s228, %s244
      %p246 = scmp.eq.s32.totalorder %s26, 0
      %p247 = por %p245, %p246
      %p248 = scmp.le.s32.totalorder 1, %s20
      %p249 = scmp.lt.s32.totalorder %s20, 3
      %p250 = pnand %p248, %p249
      %p251 = pneg %p250
      // Predicated region
      $region9: #{projector_forward.1} parent=5 // pred_check
        _
      $region10: #{projector_forward.1} parent=5 // pred_check_branch
        %253 = sbr.rel (%p250) target = $region12
      $region11: #{projector_forward.1} parent=5 // pred_region
        %s254 = ssub.s32 %s20, 1
        // Predicated region
        $region13: #{projector_forward.1} parent=11 // pred_check
          %p255 = pneg %p67
        $region14: #{projector_forward.1} parent=11 // pred_check_branch
          %257 = sbr.rel (%p255) target = $region16
        $region15: #{projector_forward.1} parent=11 // pred_region
          %s259 = ssub.s32 1024, 1024
          %260 = vsyncadd [#allocation3], %s259
          %s261 = sshll.u32 [#allocation2], 4
          %s262 = int_to_ptr.vmem [resolvable:$true] %s261
          %267 = dma.hbm_to_vmem [thread:$0]  %s1, 1024, %s262, [#allocation3], 64, 64, 4
        $region16: #{projector_forward.1} parent=11 // pred_fallthru
          _
        // Predicated region
        $region17: #{projector_forward.1} parent=11 // pred_check
          %p268 = pneg %p88
        $region18: #{projector_forward.1} parent=11 // pred_check_branch
          %270 = sbr.rel (%p268) target = $region20
        $region19: #{projector_forward.1} parent=11 // pred_region
          _
        $region20: #{projector_forward.1} parent=11 // pred_fallthru
          _
        // Predicated region
        $region21: #{projector_forward.1} parent=11 // pred_check
          %p271 = pneg %p109
        $region22: #{projector_forward.1} parent=11 // pred_check_branch
          %273 = sbr.rel (%p271) target = $region24
        $region23: #{projector_forward.1} parent=11 // pred_region
          %s275 = ssub.s32 1024, 1024
          %276 = vsyncadd [#allocation6], %s275
          %s277 = sshll.u32 [#allocation5], 4
          %s278 = int_to_ptr.vmem [resolvable:$true] %s277
          %283 = dma.hbm_to_vmem [thread:$0]  %s3, 1024, %s278, [#allocation6], 64, 64, 4
        $region24: #{projector_forward.1} parent=11 // pred_fallthru
          _
        // Predicated region
        $region25: #{projector_forward.1} parent=11 // pred_check
          %p284 = pneg %p130
        $region26: #{projector_forward.1} parent=11 // pred_check_branch
          %286 = sbr.rel (%p284) target = $region28
        $region27: #{projector_forward.1} parent=11 // pred_region
          _
        $region28: #{projector_forward.1} parent=11 // pred_fallthru
          _
        // Predicated region
        $region29: #{projector_forward.1} parent=11 // pred_check
          %p287 = pneg %p151
        $region30: #{projector_forward.1} parent=11 // pred_check_branch
          %289 = sbr.rel (%p287) target = $region32
        $region31: #{projector_forward.1} parent=11 // pred_region
          %s291 = ssub.s32 1024, 1024
          %292 = vsyncadd [#allocation6], %s291
          %s293 = sshll.u32 [#allocation7], 4
          %s294 = int_to_ptr.vmem [resolvable:$true] %s293
          %299 = dma.hbm_to_vmem [thread:$0]  %s5, 1024, %s294, [#allocation6], 64, 64, 4
        $region32: #{projector_forward.1} parent=11 // pred_fallthru
          _
        // Predicated region
        $region33: #{projector_forward.1} parent=11 // pred_check
          %p300 = pneg %p172
        $region34: #{projector_forward.1} parent=11 // pred_check_branch
          %302 = sbr.rel (%p300) target = $region36
        $region35: #{projector_forward.1} parent=11 // pred_region
          _
        $region36: #{projector_forward.1} parent=11 // pred_fallthru
          _
        // Predicated region
        $region37: #{projector_forward.1} parent=11 // pred_check
          %p303 = pneg %p193
        $region38: #{projector_forward.1} parent=11 // pred_check_branch
          %305 = sbr.rel (%p303) target = $region40
        $region39: #{projector_forward.1} parent=11 // pred_region
          _
        $region40: #{projector_forward.1} parent=11 // pred_fallthru
          _
        // Predicated region
        $region41: #{projector_forward.1} parent=11 // pred_check
          %p306 = pneg %p214
        $region42: #{projector_forward.1} parent=11 // pred_check_branch
          %308 = sbr.rel (%p306) target = $region44
        $region43: #{projector_forward.1} parent=11 // pred_region
          _
        $region44: #{projector_forward.1} parent=11 // pred_fallthru
          _
      $region12: #{projector_forward.1} parent=5 // pred_fallthru
        _
      %p309 = scmp.lt.s32.totalorder %s20, 2
      // Predicated region
      $region45: #{projector_forward.1} parent=5 // pred_check
        %p310 = pneg %p309
      $region46: #{projector_forward.1} parent=5 // pred_check_branch
        %312 = sbr.rel (%p310) target = $region48
      $region47: #{projector_forward.1} parent=5 // pred_region
        // Predicated region
        $region49: #{projector_forward.1} parent=47 // pred_check
          %p313 = pneg %p40
        $region50: #{projector_forward.1} parent=47 // pred_check_branch
          %315 = sbr.rel (%p313) target = $region52
        $region51: #{projector_forward.1} parent=47 // pred_region
          %p316 = scmp.lt.s32.totalorder %s20, 1
          %s317 = scalar_select %p316, %s20, 1
          %s318 = smul.addr %s317, 4
          %s319 = scalar_lea.vmem %s0, %s318
        $region52: #{projector_forward.1} parent=47 // pred_fallthru
          _
      $region48: #{projector_forward.1} parent=5 // pred_fallthru
        _
      %p320 = scmp.le.s32.totalorder 1, %s20
      %p321 = scmp.lt.s32.totalorder %s20, 3
      %p322 = pnand %p320, %p321
      %p323 = pneg %p322
      // Predicated region
      $region53: #{projector_forward.1} parent=5 // pred_check
        _
      $region54: #{projector_forward.1} parent=5 // pred_check_branch
        %325 = sbr.rel (%p322) target = $region56
      $region55: #{projector_forward.1} parent=5 // pred_region
        %s326 = ssub.s32 %s20, 1
        // Predicated region
        $region57: #{projector_forward.1} parent=55 // pred_check
          %p327 = pneg %p67
        $region58: #{projector_forward.1} parent=55 // pred_check_branch
          %329 = sbr.rel (%p327) target = $region60
        $region59: #{projector_forward.1} parent=55 // pred_region
          %330 = dma.done [#allocation3], 1024
        $region60: #{projector_forward.1} parent=55 // pred_fallthru
          _
        // Predicated region
        $region61: #{projector_forward.1} parent=55 // pred_check
          %p331 = pneg %p109
        $region62: #{projector_forward.1} parent=55 // pred_check_branch
          %333 = sbr.rel (%p331) target = $region64
        $region63: #{projector_forward.1} parent=55 // pred_region
          %334 = dma.done [#allocation6], 1024
        $region64: #{projector_forward.1} parent=55 // pred_fallthru
          _
        // Predicated region
        $region65: #{projector_forward.1} parent=55 // pred_check
          %p335 = pneg %p151
        $region66: #{projector_forward.1} parent=55 // pred_check_branch
          %337 = sbr.rel (%p335) target = $region68
        $region67: #{projector_forward.1} parent=55 // pred_region
          %338 = dma.done [#allocation6], 1024
        $region68: #{projector_forward.1} parent=55 // pred_fallthru
          _
        %p339 = scmp.lt.s32.totalorder %s25, 1
        %s340 = scalar_select %p339, %s25, 1
        %s341 = smul.addr %s340, 4
        %s342 = scalar_lea.vmem %s0, %s341
        %p343 = pneg %p46
        %p344 = pneg %p43
        %p345 = pneg %p67
        %p346 = pneg %p64
        %p347 = pneg %p88
        %p348 = pneg %p85
        %p349 = pneg %p109
        %p350 = pneg %p106
        %p351 = pneg %p130
        %p352 = pneg %p127
        %p353 = pneg %p151
        %p354 = pneg %p148
        %p355 = pneg %p172
        %p356 = pneg %p169
        %p357 = pneg %p193
        %p358 = pneg %p190
        %p359 = pneg %p214
        %p360 = pneg %p211
        %p361 = pneg %p240
        %p362 = pneg %p237
        %s363 = sand.u32 %s227, 1
        %s364 = scalar_lea.sflag [#allocation4], %s363
        %s365 = sand.u32 %s227, 1
        %s366 = smul.addr %s365, 8
        %s367 = scalar_lea.vmem [#allocation8], %s366
        %p368 = scmp.lt.s32.totalorder %s25, 1
        %s369 = scalar_select %p368, %s25, 1
        %s370 = smul.addr %s369, 4
        %s371 = scalar_lea.vmem %s0, %s370
        %v373 = vld [vmem:[%s371] sm:$0xf]
        %v374 = vld [vmem:[#allocation2] sm:$0xf]
        %v375 = vld [vmem:[#allocation2 + $0x4] sm:$0xf]
        %v376 = vld [vmem:[#allocation2 + $0x8] sm:$0xf]
        %v377 = vld [vmem:[#allocation2 + $0xc] sm:$0xf]
        %v378 = vld [vmem:[#allocation2 + $0x10] sm:$0xf]
        %v379 = vld [vmem:[#allocation2 + $0x14] sm:$0xf]
        %v380 = vld [vmem:[#allocation2 + $0x18] sm:$0xf]
        %v381 = vld [vmem:[#allocation2 + $0x1c] sm:$0xf]
        %v382 = vld [vmem:[#allocation2 + $0x20] sm:$0xf]
        %v383 = vld [vmem:[#allocation2 + $0x24] sm:$0xf]
        %v384 = vld [vmem:[#allocation2 + $0x28] sm:$0xf]
        %v385 = vld [vmem:[#allocation2 + $0x2c] sm:$0xf]
        %v386 = vld [vmem:[#allocation2 + $0x30] sm:$0xf]
        %v387 = vld [vmem:[#allocation2 + $0x34] sm:$0xf]
        %v388 = vld [vmem:[#allocation2 + $0x38] sm:$0xf]
        %v389 = vld [vmem:[#allocation2 + $0x3c] sm:$0xf]
        %v390 = vld [vmem:[%s2] sm:$0x1]
        %v392 = vlaneseq
        %v393 = vshrl.u32 %v392, 7
        %v394 = vsub.s32 0, %v393
        %v395 = vrot.slane %v390, %v394
        %v413 = vunpack.c.l.b16 %v374
        %v414 = vunpack.c.l.b16 %v375
        %v415 = vunpack.c.l.b16 %v376
        %v416 = vunpack.c.l.b16 %v377
        %v417 = vunpack.c.l.b16 %v378
        %v418 = vunpack.c.l.b16 %v379
        %v419 = vunpack.c.l.b16 %v380
        %v420 = vunpack.c.l.b16 %v381
        %v421 = vunpack.c.l.b16 %v382
        %v422 = vunpack.c.l.b16 %v383
        %v423 = vunpack.c.l.b16 %v384
        %v424 = vunpack.c.l.b16 %v385
        %v425 = vunpack.c.l.b16 %v386
        %v426 = vunpack.c.l.b16 %v387
        %v427 = vunpack.c.l.b16 %v388
        %v428 = vunpack.c.l.b16 %v389
        %v429 = vpack.c.b16 %v414, %v413
        %v430 = vpack.c.b16 %v416, %v415
        %v431 = vpack.c.b16 %v418, %v417
        %v432 = vpack.c.b16 %v420, %v419
        %v433 = vpack.c.b16 %v422, %v421
        %v434 = vpack.c.b16 %v424, %v423
        %v435 = vpack.c.b16 %v426, %v425
        %v436 = vpack.c.b16 %v428, %v427
        %445 = vmatprep.subr.bf16.mxu0 0
        %446 = vmatpush1.bf16.msra.mxu0 %v429
        %447 = vmatprep.subr.bf16.mxu0 0
        %448 = vmatpush1.bf16.msra.mxu0 %v430
        %449 = vmatprep.subr.bf16.mxu0 0
        %450 = vmatpush1.bf16.msra.mxu0 %v431
        %451 = vmatprep.subr.bf16.mxu0 0
        %452 = vmatpush1.bf16.msra.mxu0 %v432
        %453 = vmatprep.subr.bf16.mxu0 0
        %454 = vmatpush1.bf16.msra.mxu0 %v433
        %455 = vmatprep.subr.bf16.mxu0 0
        %456 = vmatpush1.bf16.msra.mxu0 %v434
        %457 = vmatprep.subr.bf16.mxu0 0
        %458 = vmatpush1.bf16.msra.mxu0 %v435
        %459 = vmatprep.subr.bf16.mxu0 0
        %460 = vmatpush1.bf16.msra.mxu0 %v436
        %461 = vmatprep.subr.bf16.mxu0 0
        %462 = vmatpush1.bf16.msra.mxu0 0
        %463 = vmatprep.subr.bf16.mxu0 0
        %464 = vmatpush1.bf16.msra.mxu0 0
        %465 = vmatprep.subr.bf16.mxu0 0
        %466 = vmatpush1.bf16.msra.mxu0 0
        %467 = vmatprep.subr.bf16.mxu0 0
        %468 = vmatpush1.bf16.msra.mxu0 0
        %469 = vmatprep.subr.bf16.mxu0 0
        %470 = vmatpush1.bf16.msra.mxu0 0
        %471 = vmatprep.subr.bf16.mxu0 0
        %472 = vmatpush1.bf16.msra.mxu0 0
        %473 = vmatprep.subr.bf16.mxu0 0
        %474 = vmatpush1.bf16.msra.mxu0 0
        %475 = vmatprep.subr.bf16.mxu0 0
        %476 = vmatpush1.bf16.msra.mxu0 0
        %477 = vmatprep.mubr.bf16.mxu0 0
        %478 = vmatmul.mubr.bf16.gmra.mrb[0].mxu0 %v373
        %v479 = vpop.f32.mrb[0].mxu0
        %v480 = vadd.f32 %v395, %v479
        %v481 = vpop.f32.mrb[0].mxu0
        %v482 = vpop.f32.mrb[0].mxu0
        %v483 = vpop.f32.mrb[0].mxu0
        %484 = vdwg.mxu0
        %v485 = vpack.c.bf16 %v480, %v480
        %v486 = vld [vmem:[#allocation5] sm:$0xf]
        %v487 = vld [vmem:[#allocation5 + $0x4] sm:$0xf]
        %v488 = vld [vmem:[#allocation5 + $0x8] sm:$0xf]
        %v489 = vld [vmem:[#allocation5 + $0xc] sm:$0xf]
        %v490 = vld [vmem:[#allocation5 + $0x10] sm:$0xf]
        %v491 = vld [vmem:[#allocation5 + $0x14] sm:$0xf]
        %v492 = vld [vmem:[#allocation5 + $0x18] sm:$0xf]
        %v493 = vld [vmem:[#allocation5 + $0x1c] sm:$0xf]
        %v494 = vld [vmem:[#allocation5 + $0x20] sm:$0xf]
        %v495 = vld [vmem:[#allocation5 + $0x24] sm:$0xf]
        %v496 = vld [vmem:[#allocation5 + $0x28] sm:$0xf]
        %v497 = vld [vmem:[#allocation5 + $0x2c] sm:$0xf]
        %v498 = vld [vmem:[#allocation5 + $0x30] sm:$0xf]
        %v499 = vld [vmem:[#allocation5 + $0x34] sm:$0xf]
        %v500 = vld [vmem:[#allocation5 + $0x38] sm:$0xf]
        %v501 = vld [vmem:[#allocation5 + $0x3c] sm:$0xf]
        %v502 = vld [vmem:[%s4] sm:$0x1]
        %v504 = vlaneseq
        %v505 = vshrl.u32 %v504, 7
        %v506 = vsub.s32 0, %v505
        %v507 = vrot.slane %v502, %v506
        %v525 = vunpack.c.l.b16 %v486
        %v526 = vunpack.c.l.b16 %v487
        %v527 = vunpack.c.l.b16 %v488
        %v528 = vunpack.c.l.b16 %v489
        %v529 = vunpack.c.l.b16 %v490
        %v530 = vunpack.c.l.b16 %v491
        %v531 = vunpack.c.l.b16 %v492
        %v532 = vunpack.c.l.b16 %v493
        %v533 = vunpack.c.l.b16 %v494
        %v534 = vunpack.c.l.b16 %v495
        %v535 = vunpack.c.l.b16 %v496
        %v536 = vunpack.c.l.b16 %v497
        %v537 = vunpack.c.l.b16 %v498
        %v538 = vunpack.c.l.b16 %v499
        %v539 = vunpack.c.l.b16 %v500
        %v540 = vunpack.c.l.b16 %v501
        %v541 = vpack.c.b16 %v526, %v525
        %v542 = vpack.c.b16 %v528, %v527
        %v543 = vpack.c.b16 %v530, %v529
        %v544 = vpack.c.b16 %v532, %v531
        %v545 = vpack.c.b16 %v534, %v533
        %v546 = vpack.c.b16 %v536, %v535
        %v547 = vpack.c.b16 %v538, %v537
        %v548 = vpack.c.b16 %v540, %v539
        %557 = vmatprep.subr.bf16.mxu0 0
        %558 = vmatpush1.bf16.msra.mxu0 %v541
        %559 = vmatprep.subr.bf16.mxu0 0
        %560 = vmatpush1.bf16.msra.mxu0 %v542
        %561 = vmatprep.subr.bf16.mxu0 0
        %562 = vmatpush1.bf16.msra.mxu0 %v543
        %563 = vmatprep.subr.bf16.mxu0 0
        %564 = vmatpush1.bf16.msra.mxu0 %v544
        %565 = vmatprep.subr.bf16.mxu0 0
        %566 = vmatpush1.bf16.msra.mxu0 %v545
        %567 = vmatprep.subr.bf16.mxu0 0
        %568 = vmatpush1.bf16.msra.mxu0 %v546
        %569 = vmatprep.subr.bf16.mxu0 0
        %570 = vmatpush1.bf16.msra.mxu0 %v547
        %571 = vmatprep.subr.bf16.mxu0 0
        %572 = vmatpush1.bf16.msra.mxu0 %v548
        %573 = vmatprep.subr.bf16.mxu0 0
        %574 = vmatpush1.bf16.msra.mxu0 0
        %575 = vmatprep.subr.bf16.mxu0 0
        %576 = vmatpush1.bf16.msra.mxu0 0
        %577 = vmatprep.subr.bf16.mxu0 0
        %578 = vmatpush1.bf16.msra.mxu0 0
        %579 = vmatprep.subr.bf16.mxu0 0
        %580 = vmatpush1.bf16.msra.mxu0 0
        %581 = vmatprep.subr.bf16.mxu0 0
        %582 = vmatpush1.bf16.msra.mxu0 0
        %583 = vmatprep.subr.bf16.mxu0 0
        %584 = vmatpush1.bf16.msra.mxu0 0
        %585 = vmatprep.subr.bf16.mxu0 0
        %586 = vmatpush1.bf16.msra.mxu0 0
        %587 = vmatprep.subr.bf16.mxu0 0
        %588 = vmatpush1.bf16.msra.mxu0 0
        %589 = vmatprep.mubr.bf16.mxu0 0
        %590 = vmatmul.mubr.bf16.gmra.mrb[0].mxu0 %v485
        %v591 = vpop.f32.mrb[0].mxu0
        %v592 = vadd.f32 %v507, %v591
        %v593 = vpop.f32.mrb[0].mxu0
        %v594 = vpop.f32.mrb[0].mxu0
        %v595 = vpop.f32.mrb[0].mxu0
        %596 = vdwg.mxu0
        %v597 = vpack.c.bf16 %v592, %v592
        %v598 = vld [vmem:[#allocation7] sm:$0xf]
        %v599 = vld [vmem:[#allocation7 + $0x4] sm:$0xf]
        %v600 = vld [vmem:[#allocation7 + $0x8] sm:$0xf]
        %v601 = vld [vmem:[#allocation7 + $0xc] sm:$0xf]
        %v602 = vld [vmem:[#allocation7 + $0x10] sm:$0xf]
        %v603 = vld [vmem:[#allocation7 + $0x14] sm:$0xf]
        %v604 = vld [vmem:[#allocation7 + $0x18] sm:$0xf]
        %v605 = vld [vmem:[#allocation7 + $0x1c] sm:$0xf]
        %v606 = vld [vmem:[#allocation7 + $0x20] sm:$0xf]
        %v607 = vld [vmem:[#allocation7 + $0x24] sm:$0xf]
        %v608 = vld [vmem:[#allocation7 + $0x28] sm:$0xf]
        %v609 = vld [vmem:[#allocation7 + $0x2c] sm:$0xf]
        %v610 = vld [vmem:[#allocation7 + $0x30] sm:$0xf]
        %v611 = vld [vmem:[#allocation7 + $0x34] sm:$0xf]
        %v612 = vld [vmem:[#allocation7 + $0x38] sm:$0xf]
        %v613 = vld [vmem:[#allocation7 + $0x3c] sm:$0xf]
        %v614 = vld [vmem:[%s6] sm:$0x1]
        %v616 = vlaneseq
        %v617 = vshrl.u32 %v616, 7
        %v618 = vsub.s32 0, %v617
        %v619 = vrot.slane %v614, %v618
        %v637 = vunpack.c.l.b16 %v598
        %v638 = vunpack.c.l.b16 %v599
        %v639 = vunpack.c.l.b16 %v600
        %v640 = vunpack.c.l.b16 %v601
        %v641 = vunpack.c.l.b16 %v602
        %v642 = vunpack.c.l.b16 %v603
        %v643 = vunpack.c.l.b16 %v604
        %v644 = vunpack.c.l.b16 %v605
        %v645 = vunpack.c.l.b16 %v606
        %v646 = vunpack.c.l.b16 %v607
        %v647 = vunpack.c.l.b16 %v608
        %v648 = vunpack.c.l.b16 %v609
        %v649 = vunpack.c.l.b16 %v610
        %v650 = vunpack.c.l.b16 %v611
        %v651 = vunpack.c.l.b16 %v612
        %v652 = vunpack.c.l.b16 %v613
        %v653 = vpack.c.b16 %v638, %v637
        %v654 = vpack.c.b16 %v640, %v639
        %v655 = vpack.c.b16 %v642, %v641
        %v656 = vpack.c.b16 %v644, %v643
        %v657 = vpack.c.b16 %v646, %v645
        %v658 = vpack.c.b16 %v648, %v647
        %v659 = vpack.c.b16 %v650, %v649
        %v660 = vpack.c.b16 %v652, %v651
        %669 = vmatprep.subr.bf16.mxu0 0
        %670 = vmatpush1.bf16.msra.mxu0 %v653
        %671 = vmatprep.subr.bf16.mxu0 0
        %672 = vmatpush1.bf16.msra.mxu0 %v654
        %673 = vmatprep.subr.bf16.mxu0 0
        %674 = vmatpush1.bf16.msra.mxu0 %v655
        %675 = vmatprep.subr.bf16.mxu0 0
        %676 = vmatpush1.bf16.msra.mxu0 %v656
        %677 = vmatprep.subr.bf16.mxu0 0
        %678 = vmatpush1.bf16.msra.mxu0 %v657
        %679 = vmatprep.subr.bf16.mxu0 0
        %680 = vmatpush1.bf16.msra.mxu0 %v658
        %681 = vmatprep.subr.bf16.mxu0 0
        %682 = vmatpush1.bf16.msra.mxu0 %v659
        %683 = vmatprep.subr.bf16.mxu0 0
        %684 = vmatpush1.bf16.msra.mxu0 %v660
        %685 = vmatprep.subr.bf16.mxu0 0
        %686 = vmatpush1.bf16.msra.mxu0 0
        %687 = vmatprep.subr.bf16.mxu0 0
        %688 = vmatpush1.bf16.msra.mxu0 0
        %689 = vmatprep.subr.bf16.mxu0 0
        %690 = vmatpush1.bf16.msra.mxu0 0
        %691 = vmatprep.subr.bf16.mxu0 0
        %692 = vmatpush1.bf16.msra.mxu0 0
        %693 = vmatprep.subr.bf16.mxu0 0
        %694 = vmatpush1.bf16.msra.mxu0 0
        %695 = vmatprep.subr.bf16.mxu0 0
        %696 = vmatpush1.bf16.msra.mxu0 0
        %697 = vmatprep.subr.bf16.mxu0 0
        %698 = vmatpush1.bf16.msra.mxu0 0
        %699 = vmatprep.subr.bf16.mxu0 0
        %700 = vmatpush1.bf16.msra.mxu0 0
        %701 = vmatprep.mubr.bf16.mxu0 0
        %702 = vmatmul.mubr.bf16.gmra.mrb[0].mxu0 %v597
        %v703 = vpop.f32.mrb[0].mxu0
        %v704 = vadd.f32 %v619, %v703
        %v705 = vpop.f32.mrb[0].mxu0
        %v706 = vpop.f32.mrb[0].mxu0
        %v707 = vpop.f32.mrb[0].mxu0
        %708 = vdwg.mxu0
        %v709 = vpack.c.bf16 %v704, %v704
        %v710 = vld [vmem:[%s7] sm:$0xf]
        %v711 = vld [vmem:[%s7 + $0x4] sm:$0xf]
        %v712 = vld [vmem:[%s7 + $0x8] sm:$0xf]
        %v713 = vld [vmem:[%s7 + $0xc] sm:$0xf]
        %v714 = vld [vmem:[%s7 + $0x10] sm:$0xf]
        %v715 = vld [vmem:[%s7 + $0x14] sm:$0xf]
        %v716 = vld [vmem:[%s7 + $0x18] sm:$0xf]
        %v717 = vld [vmem:[%s7 + $0x1c] sm:$0xf]
        %v718 = vld [vmem:[%s7 + $0x20] sm:$0xf]
        %v719 = vld [vmem:[%s7 + $0x24] sm:$0xf]
        %v720 = vld [vmem:[%s7 + $0x28] sm:$0xf]
        %v721 = vld [vmem:[%s7 + $0x2c] sm:$0xf]
        %v722 = vld [vmem:[%s7 + $0x30] sm:$0xf]
        %v723 = vld [vmem:[%s7 + $0x34] sm:$0xf]
        %v724 = vld [vmem:[%s7 + $0x38] sm:$0xf]
        %v725 = vld [vmem:[%s7 + $0x3c] sm:$0xf]
        %v726 = vld [vmem:[%s8] sm:$0x1]
        %v728 = vlaneseq
        %v729 = vshrl.u32 %v728, 7
        %v730 = vsub.s32 0, %v729
        %v731 = vrot.slane %v726, %v730
        %v749 = vunpack.c.l.b16 %v710
        %v750 = vunpack.c.l.b16 %v711
        %v751 = vunpack.c.l.b16 %v712
        %v752 = vunpack.c.l.b16 %v713
        %v753 = vunpack.c.l.b16 %v714
        %v754 = vunpack.c.l.b16 %v715
        %v755 = vunpack.c.l.b16 %v716
        %v756 = vunpack.c.l.b16 %v717
        %v757 = vunpack.c.l.b16 %v718
        %v758 = vunpack.c.l.b16 %v719
        %v759 = vunpack.c.l.b16 %v720
        %v760 = vunpack.c.l.b16 %v721
        %v761 = vunpack.c.l.b16 %v722
        %v762 = vunpack.c.l.b16 %v723
        %v763 = vunpack.c.l.b16 %v724
        %v764 = vunpack.c.l.b16 %v725
        %v765 = vpack.c.b16 %v750, %v749
        %v766 = vpack.c.b16 %v752, %v751
        %v767 = vpack.c.b16 %v754, %v753
        %v768 = vpack.c.b16 %v756, %v755
        %v769 = vpack.c.b16 %v758, %v757
        %v770 = vpack.c.b16 %v760, %v759
        %v771 = vpack.c.b16 %v762, %v761
        %v772 = vpack.c.b16 %v764, %v763
        %781 = vmatprep.subr.bf16.mxu0 0
        %782 = vmatpush1.bf16.msra.mxu0 %v765
        %783 = vmatprep.subr.bf16.mxu0 0
        %784 = vmatpush1.bf16.msra.mxu0 %v766
        %785 = vmatprep.subr.bf16.mxu0 0
        %786 = vmatpush1.bf16.msra.mxu0 %v767
        %787 = vmatprep.subr.bf16.mxu0 0
        %788 = vmatpush1.bf16.msra.mxu0 %v768
        %789 = vmatprep.subr.bf16.mxu0 0
        %790 = vmatpush1.bf16.msra.mxu0 %v769
        %791 = vmatprep.subr.bf16.mxu0 0
        %792 = vmatpush1.bf16.msra.mxu0 %v770
        %793 = vmatprep.subr.bf16.mxu0 0
        %794 = vmatpush1.bf16.msra.mxu0 %v771
        %795 = vmatprep.subr.bf16.mxu0 0
        %796 = vmatpush1.bf16.msra.mxu0 %v772
        %797 = vmatprep.subr.bf16.mxu0 0
        %798 = vmatpush1.bf16.msra.mxu0 0
        %799 = vmatprep.subr.bf16.mxu0 0
        %800 = vmatpush1.bf16.msra.mxu0 0
        %801 = vmatprep.subr.bf16.mxu0 0
        %802 = vmatpush1.bf16.msra.mxu0 0
        %803 = vmatprep.subr.bf16.mxu0 0
        %804 = vmatpush1.bf16.msra.mxu0 0
        %805 = vmatprep.subr.bf16.mxu0 0
        %806 = vmatpush1.bf16.msra.mxu0 0
        %807 = vmatprep.subr.bf16.mxu0 0
        %808 = vmatpush1.bf16.msra.mxu0 0
        %809 = vmatprep.subr.bf16.mxu0 0
        %810 = vmatpush1.bf16.msra.mxu0 0
        %811 = vmatprep.subr.bf16.mxu0 0
        %812 = vmatpush1.bf16.msra.mxu0 0
        %813 = vmatprep.mubr.bf16.mxu0 0
        %814 = vmatmul.mubr.bf16.gmra.mrb[0].mxu0 %v709
        %v815 = vpop.f32.mrb[0].mxu0
        %v816 = vadd.f32 %v731, %v815
        %v817 = vpop.f32.mrb[0].mxu0
        %v818 = vpop.f32.mrb[0].mxu0
        %v819 = vpop.f32.mrb[0].mxu0
        %820 = vdwg.mxu0
        %821 = vst [vmem:[%s367] sm:$0xff] %v816
        %s822 = sand.u32 %s227, 1
        %s823 = scalar_lea.sflag [#allocation4], %s822
        %s824 = sand.u32 %s227, 1
        %s825 = smul.addr %s824, 8
        %s826 = scalar_lea.vmem [#allocation8], %s825
        // Predicated region
        $region69: #{projector_forward.1} parent=55 // pred_check
          %p827 = pneg %p237
        $region70: #{projector_forward.1} parent=55 // pred_check_branch
          %829 = sbr.rel (%p827) target = $region72
        $region71: #{projector_forward.1} parent=55 // pred_region
          %s831 = ssub.s32 128, 128
          %832 = vsyncadd %s823, %s831
          %s833 = smul.addr %s25, 128
          %s834 = scalar_lea.hbm %s9, %s833
          %s836 = sshll.u32 %s826, 4
          %s837 = int_to_ptr.vmem [resolvable:$true] %s836
          %839 = dma.vmem_to_hbm [thread:$0]  %s837, 128, %s834, %s823
        $region72: #{projector_forward.1} parent=55 // pred_fallthru
          _
      $region56: #{projector_forward.1} parent=5 // pred_fallthru
        _
      %p840 = scmp.le.s32.totalorder 2, %s20
      // Predicated region
      $region73: #{projector_forward.1} parent=5 // pred_check
        %p841 = pneg %p840
      $region74: #{projector_forward.1} parent=5 // pred_check_branch
        %843 = sbr.rel (%p841) target = $region76
      $region75: #{projector_forward.1} parent=5 // pred_region
        %s844 = ssub.s32 %s20, 2
        // Predicated region
        $region77: #{projector_forward.1} parent=75 // pred_check
          %p845 = pneg %p243
        $region78: #{projector_forward.1} parent=75 // pred_check_branch
          %847 = sbr.rel (%p845) target = $region80
        $region79: #{projector_forward.1} parent=75 // pred_region
          %s848 = sand.u32 %s228, 1
          %s849 = scalar_lea.sflag [#allocation4], %s848
          %s850 = sand.u32 %s228, 1
          %s851 = smul.addr %s850, 8
          %s852 = scalar_lea.vmem [#allocation8], %s851
          %853 = dma.done %s849, 128
        $region80: #{projector_forward.1} parent=75 // pred_fallthru
          _
      $region76: #{projector_forward.1} parent=5 // pred_fallthru
        _
    $region6: #{projector_forward.1} parent=1 // loop_footer
      %s24 = sadd.s32 1, %s20
    $region7: #{projector_forward.1} parent=1 // loop_footer_branch
      %19 = sbr.rel target = $region3
    $region8: #{projector_forward.1} parent=1 // loop_exit
      _
    %854 = vsyncpa [#allocation3], 1
    %s855 = scalar_lea.sflag [#allocation3], 1
    %856 = vsyncpa %s855, 1
    %857 = vsyncpa [#allocation6], 1
    %858 = vsyncpa [#allocation4], 1
    %s859 = scalar_lea.sflag [#allocation4], 1
    %860 = vsyncpa %s859, 1

</llo_original>
